<compile_context>
chip_gen: v5e
topology: v5e:2x2
jax: 0.10.0
libtpu: 0.0.40
codegen_flags: <defaults>
</compile_context>

<pallas_src>
import math

import jax
import jax.numpy as jnp
from jax.experimental import pallas as pl
from jax.experimental.pallas import tpu as pltpu


def _fusion_kernel(g_ref, rel_ref, q_ref, o_ref):
    # Blocks: g (bb, N, H), rel (bb, N, 1), q (bb, 1, H), o (bb, N, 2H).
    bb, N, H = g_ref.shape

    scaled = g_ref[...] * rel_ref[...]                    # (bb,N,H) * (bb,N,1): lane bcast
    q_b = jnp.broadcast_to(q_ref[...], (bb, N, H))        # (bb,1,H) -> (bb,N,H): sublane bcast

    if H % 128 == 0:
        # Two unmasked 128-lane-aligned slab stores; no concat temporary.
        o_ref[..., :H] = scaled.astype(o_ref.dtype)
        o_ref[..., H:] = q_b.astype(o_ref.dtype)
    else:
        # 2H-wide (e.g. 128-lane) single dense store.
        o_ref[...] = jnp.concatenate([scaled, q_b], axis=-1).astype(o_ref.dtype)


def _pick_batch_block(B, N, H, itemsize):
    """Largest bb that divides B, keeps >=2 grid steps when B>=2, and fits VMEM."""
    # Bytes live per batch row per pipeline buffer (inputs + output tile).
    per_b = (N * H + N + H + N * 2 * H) * itemsize
    budget = 20 * 1024 * 1024          # per-buffer; x2 double-buffering ~= 40 MiB < 64 MiB (v7x)
    bb = max(1, min(B, budget // max(per_b, 1)))
    bb = min(bb, max(1, B // 2))       # >= 2 grid steps when possible (v7x megacore)
    while B % bb:                      # bb must divide B
        bb -= 1
    return bb


def fusion_forward(graph_repr, query, params, *, batch_block=None):
    """graph_repr: [B, N, H], query: [B, H] -> [B, N, 2H]."""
    B, N, H = graph_repr.shape
    L = params["w"].shape[1]
    assert L == N, "label_size must equal num_nodes (required by diag_embed matmul)"

    # Tiny gate (B*N values): plain XLA, fed to the kernel pre-shaped (B, N, 1).
    rel = jax.nn.sigmoid(query @ params["w"] + params["b"][0])      # (B, N)
    rel3 = rel[:, :, None].astype(graph_repr.dtype)                 # (B, N, 1)
    q3 = query[:, None, :]                                          # (B, 1, H)

    itemsize = graph_repr.dtype.itemsize
    bb = _pick_batch_block(B, N, H, itemsize) if batch_block is None else batch_block
    assert B % bb == 0

    bytes_accessed = (B * N * H + B * N + B * H + B * N * 2 * H) * itemsize
    cost = pl.CostEstimate(flops=B * N * H, transcendentals=0,
                           bytes_accessed=bytes_accessed)

    return pl.pallas_call(
        _fusion_kernel,
        out_shape=jax.ShapeDtypeStruct((B, N, 2 * H), graph_repr.dtype),
        grid=(B // bb,),
        in_specs=[
            pl.BlockSpec((bb, N, H), lambda i: (i, 0, 0)),    # graph_repr
            pl.BlockSpec((bb, N, 1), lambda i: (i, 0, 0)),    # gate
            pl.BlockSpec((bb, 1, H), lambda i: (i, 0, 0)),    # query
        ],
        out_specs=pl.BlockSpec((bb, N, 2 * H), lambda i: (i, 0, 0)),
        compiler_params=pltpu.CompilerParams(
            dimension_semantics=("parallel",),                 # shard batch blocks across TCs
            vmem_limit_bytes=48 * 1024 * 1024),                # raise 16/32 MiB scoped default
        cost_estimate=cost,
    )(graph_repr, rel3, q3)


def init_fusion_params(key, hidden_size, label_size):
    """Mirror torch.nn.Linear default init; W stored as [in_features, out_features]."""
    kw, kb = jax.random.split(key)
    bound = 1.0 / math.sqrt(hidden_size)
    w = jax.random.uniform(kw, (hidden_size, label_size), jnp.float32, -bound, bound)
    b = jax.random.uniform(kb, (1, label_size), jnp.float32, -bound, bound)
    return dict(w=w, b=b)


def fusion_reference(graph_repr, query, params):
    """Pure-JAX replica of the PyTorch FusionModule forward (incl. diag_embed)."""
    rel = jax.nn.sigmoid(query @ params["w"] + params["b"][0])           # (B, N)
    graph_weight = jnp.einsum("bi,ij->bij", rel, jnp.eye(rel.shape[1]))  # diag_embed
    scaled = jnp.einsum("bij,bjh->bih", graph_weight, graph_repr)
    q_b = jnp.broadcast_to(query[:, None, :], graph_repr.shape)
    return jnp.concatenate([scaled, q_b], axis=-1)


if __name__ == "__main__":
    # num_nodes == label_size (required by the module's matmul); 2H = 128 lanes.
    B, N, H = 2, 8, 64

    key = jax.random.PRNGKey(0)
    kg, kq, kp = jax.random.split(key, 3)
    graph_repr = jax.random.normal(kg, (B, N, H), dtype=jnp.float32)
    query = jax.random.normal(kq, (B, H), dtype=jnp.float32)
    params = init_fusion_params(kp, H, N)

    out = fusion_forward(graph_repr, query, params)
    out = jax.block_until_ready(out)

    ref = fusion_reference(graph_repr, query, params)
    assert out.shape == (B, N, 2 * H), out.shape
    assert jnp.allclose(out, ref, atol=1e-5, rtol=1e-5), \
        float(jnp.max(jnp.abs(out - ref)))

    print("KERNEL_OK")
</pallas_src>

<mosaic_0001>
module attributes {stable_mosaic.version = 11 : i64} {
  func.func @_fusion_kernel(%arg0: i32, %arg1: memref<1x8x64xf32, #tpu.memory_space<vmem>>, %arg2: memref<1x8x1xf32, #tpu.memory_space<vmem>>, %arg3: memref<1x1x64xf32, #tpu.memory_space<vmem>>, %arg4: memref<1x8x128xf32, #tpu.memory_space<vmem>>) attributes {dimension_semantics = [#tpu.dimension_semantics<parallel>], iteration_bounds = array<i64: 2>, scalar_prefetch = 0 : i64, scratch_operands = 0 : i64, tpu.core_type = #tpu.core_type<tc>, window_params = [{transform_indices = @transform_0, window_bounds = array<i64: 1, 8, 64>}, {transform_indices = @transform_1, window_bounds = array<i64: 1, 8, 1>}, {transform_indices = @transform_2, window_bounds = array<i64: 1, 1, 64>}, {transform_indices = @transform_3, window_bounds = array<i64: 1, 8, 128>}]} {
    %c0 = arith.constant 0 : index
    %c0_0 = arith.constant 0 : index
    %c0_1 = arith.constant 0 : index
    %0 = vector.load %arg1[%c0, %c0_0, %c0_1] : memref<1x8x64xf32, #tpu.memory_space<vmem>>, vector<1x8x64xf32>
    %c0_2 = arith.constant 0 : index
    %c0_3 = arith.constant 0 : index
    %c0_4 = arith.constant 0 : index
    %1 = vector.load %arg2[%c0_2, %c0_3, %c0_4] : memref<1x8x1xf32, #tpu.memory_space<vmem>>, vector<1x8x1xf32>
    %2 = vector.broadcast %1 : vector<1x8x1xf32> to vector<1x8x64xf32>
    %3 = arith.mulf %0, %2 : vector<1x8x64xf32>
    %c0_5 = arith.constant 0 : index
    %c0_6 = arith.constant 0 : index
    %c0_7 = arith.constant 0 : index
    %4 = vector.load %arg3[%c0_5, %c0_6, %c0_7] : memref<1x1x64xf32, #tpu.memory_space<vmem>>, vector<1x1x64xf32>
    %5 = vector.shape_cast %4 : vector<1x1x64xf32> to vector<1x1x64xf32>
    %6 = vector.broadcast %5 : vector<1x1x64xf32> to vector<1x8x64xf32>
    %7 = tpu.concatenate %3, %6 in 2 : vector<1x8x64xf32>, vector<1x8x64xf32> -> vector<1x8x128xf32>
    %c0_8 = arith.constant 0 : index
    %c0_9 = arith.constant 0 : index
    %c0_10 = arith.constant 0 : index
    %8 = vector.load %arg4[%c0_8, %c0_9, %c0_10] : memref<1x8x128xf32, #tpu.memory_space<vmem>>, vector<1x8x128xf32>
    tpu.vector_store %arg4[%c0_8, %c0_9, %c0_10], %7 {strides = array<i32>} : memref<1x8x128xf32, #tpu.memory_space<vmem>>, vector<1x8x128xf32>,
    return
  }
  func.func @transform_0(%arg0: i32) -> (i32, i32, i32) {
    %c0_i32 = arith.constant 0 : i32
    %c0_i32_0 = arith.constant 0 : i32
    %c0_i32_1 = arith.constant 0 : i32
    return %arg0, %c0_i32, %c0_i32_0 : i32, i32, i32
  }
  func.func @transform_1(%arg0: i32) -> (i32, i32, i32) {
    %c0_i32 = arith.constant 0 : i32
    %c0_i32_0 = arith.constant 0 : i32
    %c0_i32_1 = arith.constant 0 : i32
    return %arg0, %c0_i32, %c0_i32_0 : i32, i32, i32
  }
  func.func @transform_2(%arg0: i32) -> (i32, i32, i32) {
    %c0_i32 = arith.constant 0 : i32
    %c0_i32_0 = arith.constant 0 : i32
    %c0_i32_1 = arith.constant 0 : i32
    return %arg0, %c0_i32, %c0_i32_0 : i32, i32, i32
  }
  func.func @transform_3(%arg0: i32) -> (i32, i32, i32) {
    %c0_i32 = arith.constant 0 : i32
    %c0_i32_0 = arith.constant 0 : i32
    %c0_i32_1 = arith.constant 0 : i32
    return %arg0, %c0_i32, %c0_i32_0 : i32, i32, i32
  }
}

</mosaic_0001>

<llo_original>
// kernel: tpu_custom_call.1
$region0: #{tpu_custom_call.1}
  #allocation0 [shape = 'u32[]', space=smem, size = 0x4, offset = 0x4, fixed_abs, tag = 'smem constant byte address 0x4 - core index']
  #allocation1 [shape = 'u32[72,128]{1,0:T(1,128)}', space=vmem, size = 0x9000, scoped, tag = 'internal scratch']
  %s0 = inlined_call_operand.vmem [shape: f32[2,8,64], index: 0, kind: input, shape index: {}]
  %s1 = inlined_call_operand.vmem [shape: f32[2,8,1], index: 1, kind: input, shape index: {}]
  %s2 = inlined_call_operand.vmem [shape: f32[2,1,64], index: 2, kind: input, shape index: {}]
  %s3 = inlined_call_operand.hbm [shape: f32[2,8,128], index: 3, kind: output, shape index: {}]
  %s4 = sld [smem:[#allocation0]]
  $region45: #{tpu_custom_call.1} parent=0
    _
  %s6 = ssub.s32 1, %s4
  %s7 = scalar_select 0, %s6, %s4
  $region1: #{tpu_custom_call.1} parent=0
    #allocation2 [shape = 'u8[8192]{0}', space=vmem, size = 0x2000, scoped, tag = 'output window, operand 0']
    #allocation3 [shape = 's32[2]{0}', space=sflag, size = 0x8, scoped, tag = 'scoped memory for tpu_custom_call.1']
    %8 = vsyncpa [#allocation3], 0
    %s9 = scalar_lea.sflag [#allocation3], 1
    %10 = vsyncpa %s9, 0
    loop: start=0, step=1, limit=4
    $region2: #{tpu_custom_call.1} parent=1 // loop_pre_header
      _
    $region3: #{tpu_custom_call.1} parent=1 // loop_header
      %s12 = sphi 0, %s16
      %p13 = scmp.ge.s32.totalorder %s12, 4
      %s22 = sphi 0, %s24
      %s25 = sphi 0, %s22
      %s26 = sphi 0, %s25
      %s42 = sphi 0, %s26
      %s48 = sphi 0, %s50
      %s51 = sphi 0, %s48
      %s52 = sphi 0, %s51
      %s68 = sphi 0, %s52
      %s74 = sphi 0, %s76
      %s77 = sphi 0, %s74
      %s78 = sphi 0, %s77
      %s94 = sphi 0, %s78
      %s100 = sphi 0, %s102
      %s103 = sphi 0, %s100
      %s104 = sphi 0, %s103
      %s120 = sphi 0, %s104
    $region4: #{tpu_custom_call.1} parent=1 // loop_header_branch
      %15 = sbr.rel (%p13) target = $region8
    $region5: #{tpu_custom_call.1} parent=1 // loop_body
      %s17 = ssub.s32 %s12, 1
      %s18 = ssub.s32 %s12, 2
      %s19 = sadd.s32 %s12, 1
      %s20 = ssub.s32 %s12, %s19
      %p21 = scmp.eq.s32.totalorder %s20, 0
      %s23 = sadd.s32 %s22, 1
      %s24 = scalar_select %p21, %s22, %s23
      %p27 = pneg %p21
      %p28 = scmp.eq.s32.totalorder %s12, 1
      %p29 = por %p27, %p28
      %p30 = scmp.ne.s32.totalorder %s22, %s25
      %p31 = scmp.eq.s32.totalorder %s12, 0
      %p32 = por %p30, %p31
      %p33 = scmp.ne.s32.totalorder %s22, %s25
      %p34 = scmp.eq.s32.totalorder %s17, 1
      %p35 = por %p33, %p34
      %p36 = scmp.ne.s32.totalorder %s25, %s26
      %p37 = scmp.eq.s32.totalorder %s17, 0
      %p38 = por %p36, %p37
      %p39 = scmp.ne.s32.totalorder %s25, %s26
      %p40 = scmp.eq.s32.totalorder %s18, 1
      %p41 = por %p39, %p40
      %p43 = scmp.ne.s32.totalorder %s26, %s42
      %p44 = scmp.eq.s32.totalorder %s18, 0
      %p45 = por %p43, %p44
      %s46 = ssub.s32 %s12, %s19
      %p47 = scmp.eq.s32.totalorder %s46, 0
      %s49 = sadd.s32 %s48, 1
      %s50 = scalar_select %p47, %s48, %s49
      %p53 = pneg %p47
      %p54 = scmp.eq.s32.totalorder %s12, 1
      %p55 = por %p53, %p54
      %p56 = scmp.ne.s32.totalorder %s48, %s51
      %p57 = scmp.eq.s32.totalorder %s12, 0
      %p58 = por %p56, %p57
      %p59 = scmp.ne.s32.totalorder %s48, %s51
      %p60 = scmp.eq.s32.totalorder %s17, 1
      %p61 = por %p59, %p60
      %p62 = scmp.ne.s32.totalorder %s51, %s52
      %p63 = scmp.eq.s32.totalorder %s17, 0
      %p64 = por %p62, %p63
      %p65 = scmp.ne.s32.totalorder %s51, %s52
      %p66 = scmp.eq.s32.totalorder %s18, 1
      %p67 = por %p65, %p66
      %p69 = scmp.ne.s32.totalorder %s52, %s68
      %p70 = scmp.eq.s32.totalorder %s18, 0
      %p71 = por %p69, %p70
      %s72 = ssub.s32 %s12, %s19
      %p73 = scmp.eq.s32.totalorder %s72, 0
      %s75 = sadd.s32 %s74, 1
      %s76 = scalar_select %p73, %s74, %s75
      %p79 = pneg %p73
      %p80 = scmp.eq.s32.totalorder %s12, 1
      %p81 = por %p79, %p80
      %p82 = scmp.ne.s32.totalorder %s74, %s77
      %p83 = scmp.eq.s32.totalorder %s12, 0
      %p84 = por %p82, %p83
      %p85 = scmp.ne.s32.totalorder %s74, %s77
      %p86 = scmp.eq.s32.totalorder %s17, 1
      %p87 = por %p85, %p86
      %p88 = scmp.ne.s32.totalorder %s77, %s78
      %p89 = scmp.eq.s32.totalorder %s17, 0
      %p90 = por %p88, %p89
      %p91 = scmp.ne.s32.totalorder %s77, %s78
      %p92 = scmp.eq.s32.totalorder %s18, 1
      %p93 = por %p91, %p92
      %p95 = scmp.ne.s32.totalorder %s78, %s94
      %p96 = scmp.eq.s32.totalorder %s18, 0
      %p97 = por %p95, %p96
      %s98 = ssub.s32 %s12, %s19
      %p99 = scmp.eq.s32.totalorder %s98, 0
      %s101 = sadd.s32 %s100, 1
      %s102 = scalar_select %p99, %s100, %s101
      %p105 = pneg %p99
      %p106 = scmp.eq.s32.totalorder %s12, 1
      %p107 = por %p105, %p106
      %p108 = scmp.ne.s32.totalorder %s100, %s103
      %p109 = scmp.eq.s32.totalorder %s12, 0
      %p110 = por %p108, %p109
      %p111 = scmp.ne.s32.totalorder %s100, %s103
      %p112 = scmp.eq.s32.totalorder %s17, 1
      %p113 = por %p111, %p112
      %p114 = scmp.ne.s32.totalorder %s103, %s104
      %p115 = scmp.eq.s32.totalorder %s17, 0
      %p116 = por %p114, %p115
      %p117 = scmp.ne.s32.totalorder %s103, %s104
      %p118 = scmp.eq.s32.totalorder %s18, 1
      %p119 = por %p117, %p118
      %p121 = scmp.ne.s32.totalorder %s104, %s120
      %p122 = scmp.eq.s32.totalorder %s18, 0
      %p123 = por %p121, %p122
      %p124 = scmp.le.s32.totalorder 1, %s12
      %p125 = scmp.lt.s32.totalorder %s12, 3
      %p126 = pnand %p124, %p125
      %p127 = pneg %p126
      // Predicated region
      $region9: #{tpu_custom_call.1} parent=5 // pred_check
        _
      $region10: #{tpu_custom_call.1} parent=5 // pred_check_branch
        %129 = sbr.rel (%p126) target = $region12
      $region11: #{tpu_custom_call.1} parent=5 // pred_region
        %s130 = ssub.s32 %s12, 1
      $region12: #{tpu_custom_call.1} parent=5 // pred_fallthru
        _
      %p131 = scmp.lt.s32.totalorder %s12, 2
      // Predicated region
      $region13: #{tpu_custom_call.1} parent=5 // pred_check
        %p132 = pneg %p131
      $region14: #{tpu_custom_call.1} parent=5 // pred_check_branch
        %134 = sbr.rel (%p132) target = $region16
      $region15: #{tpu_custom_call.1} parent=5 // pred_region
        // Predicated region
        $region17: #{tpu_custom_call.1} parent=15 // pred_check
          %p135 = pneg %p32
        $region18: #{tpu_custom_call.1} parent=15 // pred_check_branch
          %137 = sbr.rel (%p135) target = $region20
        $region19: #{tpu_custom_call.1} parent=15 // pred_region
          %p138 = scmp.lt.s32.totalorder %s12, 1
          %s139 = scalar_select %p138, %s12, 1
          %s140 = smul.addr %s139, 8
          %s141 = scalar_lea.vmem %s0, %s140
        $region20: #{tpu_custom_call.1} parent=15 // pred_fallthru
          _
        // Predicated region
        $region21: #{tpu_custom_call.1} parent=15 // pred_check
          %p142 = pneg %p58
        $region22: #{tpu_custom_call.1} parent=15 // pred_check_branch
          %144 = sbr.rel (%p142) target = $region24
        $region23: #{tpu_custom_call.1} parent=15 // pred_region
          %p145 = scmp.lt.s32.totalorder %s12, 1
          %s146 = scalar_select %p145, %s12, 1
          %s147 = smul.addr %s146, 8
          %s148 = scalar_lea.vmem %s1, %s147
        $region24: #{tpu_custom_call.1} parent=15 // pred_fallthru
          _
        // Predicated region
        $region25: #{tpu_custom_call.1} parent=15 // pred_check
          %p149 = pneg %p84
        $region26: #{tpu_custom_call.1} parent=15 // pred_check_branch
          %151 = sbr.rel (%p149) target = $region28
        $region27: #{tpu_custom_call.1} parent=15 // pred_region
          %p152 = scmp.lt.s32.totalorder %s12, 1
          %s153 = scalar_select %p152, %s12, 1
          %s154 = scalar_lea.vmem %s2, %s153
        $region28: #{tpu_custom_call.1} parent=15 // pred_fallthru
          _
      $region16: #{tpu_custom_call.1} parent=5 // pred_fallthru
        _
      %p155 = scmp.le.s32.totalorder 1, %s12
      %p156 = scmp.lt.s32.totalorder %s12, 3
      %p157 = pnand %p155, %p156
      %p158 = pneg %p157
      // Predicated region
      $region29: #{tpu_custom_call.1} parent=5 // pred_check
        _
      $region30: #{tpu_custom_call.1} parent=5 // pred_check_branch
        %160 = sbr.rel (%p157) target = $region32
      $region31: #{tpu_custom_call.1} parent=5 // pred_region
        %s161 = ssub.s32 %s12, 1
        %p162 = scmp.lt.s32.totalorder %s17, 1
        %s163 = scalar_select %p162, %s17, 1
        %s164 = smul.addr %s163, 8
        %s165 = scalar_lea.vmem %s0, %s164
        %p166 = pneg %p38
        %p167 = pneg %p35
        %p168 = scmp.lt.s32.totalorder %s17, 1
        %s169 = scalar_select %p168, %s17, 1
        %s170 = smul.addr %s169, 8
        %s171 = scalar_lea.vmem %s1, %s170
        %p172 = pneg %p64
        %p173 = pneg %p61
        %p174 = scmp.lt.s32.totalorder %s17, 1
        %s175 = scalar_select %p174, %s17, 1
        %s176 = scalar_lea.vmem %s2, %s175
        %p177 = pneg %p90
        %p178 = pneg %p87
        %p179 = pneg %p116
        %p180 = pneg %p113
        %s181 = sand.u32 %s103, 1
        %s182 = scalar_lea.sflag [#allocation3], %s181
        %s183 = sand.u32 %s103, 1
        %s184 = smul.addr %s183, 8
        %s185 = scalar_lea.vmem [#allocation2], %s184
        %p186 = scmp.lt.s32.totalorder %s17, 1
        %s187 = scalar_select %p186, %s17, 1
        %s188 = smul.addr %s187, 8
        %s189 = scalar_lea.vmem %s0, %s188
        %p190 = scmp.lt.s32.totalorder %s17, 1
        %s191 = scalar_select %p190, %s17, 1
        %s192 = smul.addr %s191, 8
        %s193 = scalar_lea.vmem %s1, %s192
        %p194 = scmp.lt.s32.totalorder %s17, 1
        %s195 = scalar_select %p194, %s17, 1
        %s196 = scalar_lea.vmem %s2, %s195
        %v197 = vld [vmem:[%s189] sm:$0xff]
        %v198 = vld [vmem:[%s193] sm:$0xff]
        %200 = vset.pattern.permute.xlu0 0
        %201 = vperm.xlu0 %200, %v198
        %v202 = vpop.permute.xlu0 %201
        %v204 = vmul.f32 %v197, %v202
        %v205 = vld [vmem:[%s196] sm:$0x1]
        %v207 = vperm.slane %v205, 0
        %208 = vrot.lane.b32.xlu0 %v207, 64
        %v209 = vpop.permute.xlu0 %208
        %vm211 = vcmask 523264
        %v212 = vsel %vm211, %v204, %v209
        %213 = vst [vmem:[%s185] sm:$0xff] %v212
        %s214 = sand.u32 %s103, 1
        %s215 = scalar_lea.sflag [#allocation3], %s214
        %s216 = sand.u32 %s103, 1
        %s217 = smul.addr %s216, 8
        %s218 = scalar_lea.vmem [#allocation2], %s217
        // Predicated region
        $region33: #{tpu_custom_call.1} parent=31 // pred_check
          %p219 = pneg %p113
        $region34: #{tpu_custom_call.1} parent=31 // pred_check_branch
          %221 = sbr.rel (%p219) target = $region36
        $region35: #{tpu_custom_call.1} parent=31 // pred_region
          %223 = vsyncadd %s215, 0
          %s224 = smul.addr %s17, 8
          %s225 = scalar_lea.hbm %s3, %s224
          %s227 = sshll.u32 %s218, 4
          %s228 = int_to_ptr.vmem [resolvable:$true] %s227
          %s229 = sshll.u32 %s225, 4
          %s230 = int_to_ptr.hbm [resolvable:$true] %s229
          %232 = dma.vmem_to_hbm [thread:$0]  %s228, 128, %s230, %s215
        $region36: #{tpu_custom_call.1} parent=31 // pred_fallthru
          _
      $region32: #{tpu_custom_call.1} parent=5 // pred_fallthru
        _
      %p233 = scmp.le.s32.totalorder 2, %s12
      // Predicated region
      $region37: #{tpu_custom_call.1} parent=5 // pred_check
        %p234 = pneg %p233
      $region38: #{tpu_custom_call.1} parent=5 // pred_check_branch
        %236 = sbr.rel (%p234) target = $region40
      $region39: #{tpu_custom_call.1} parent=5 // pred_region
        %s237 = ssub.s32 %s12, 2
        // Predicated region
        $region41: #{tpu_custom_call.1} parent=39 // pred_check
          %p238 = pneg %p119
        $region42: #{tpu_custom_call.1} parent=39 // pred_check_branch
          %240 = sbr.rel (%p238) target = $region44
        $region43: #{tpu_custom_call.1} parent=39 // pred_region
          %s241 = sand.u32 %s104, 1
          %s242 = scalar_lea.sflag [#allocation3], %s241
          %s243 = sand.u32 %s104, 1
          %s244 = smul.addr %s243, 8
          %s245 = scalar_lea.vmem [#allocation2], %s244
          %247 = dma.done %s242, 128
        $region44: #{tpu_custom_call.1} parent=39 // pred_fallthru
          _
      $region40: #{tpu_custom_call.1} parent=5 // pred_fallthru
        _
    $region6: #{tpu_custom_call.1} parent=1 // loop_footer
      %s16 = sadd.s32 1, %s12
    $region7: #{tpu_custom_call.1} parent=1 // loop_footer_branch
      %11 = sbr.rel target = $region3
    $region8: #{tpu_custom_call.1} parent=1 // loop_exit
      _
    %248 = vsyncpa [#allocation3], 1
    %s249 = scalar_lea.sflag [#allocation3], 1
    %250 = vsyncpa %s249, 1

</llo_original>
